<compile_context>
chip_gen: v7x
topology: tpu7x:2x2x1
jax: 0.10.0
libtpu: 0.0.40
codegen_flags: <defaults>
</compile_context>

<pallas_src>
import jax
import jax.numpy as jnp
from jax.experimental import pallas as pl
from jax.experimental.pallas import tpu as pltpu


def _pa_kernel(x_ref, w1_ref, b1_ref, w2_ref, b2_ref, o_ref):
    # x_ref:  (C, TP)   channels on sublanes, pixels on lanes (batch squeezed)
    # w1_ref: (C8, C)   conv1 1x1 weight (VMEM, resident across the grid)
    # b1_ref: (C8, 1)   conv1 bias (VMEM)
    # w2_ref: (C8, 1)   conv2 1x1 weight as a column (VMEM)
    # b2_ref: (1,)      conv2 bias (SMEM scalar)
    # o_ref:  (C, TP)
    x = x_ref[...]                                   # native dtype, no upcast

    # conv1 (1x1) + ReLU on the MXU: (C8, C) @ (C, TP), f32 accumulation.
    h = jnp.dot(w1_ref[...].astype(x.dtype), x,
                preferred_element_type=jnp.float32)
    h = jnp.maximum(h + b1_ref[...], 0.0)            # (C8, TP) f32

    # conv2 (1 output channel): VPU multiply + sublane (XLU) reduction —
    # cheaper than an N=1 MXU matmul.
    y = jnp.sum(h * w2_ref[...], axis=0, keepdims=True) + b2_ref[0]   # (1, TP)

    # sigmoid: exp and reciprocal both go to the EUP slot.
    y = pl.reciprocal(1.0 + jnp.exp(-y), approx=True)

    # Per-pixel attention scale, broadcast over channels; lane-dense store in
    # the input dtype (y cast down once — it is only (1, TP)).
    o_ref[...] = x * y.astype(x.dtype)


def pa_layer_pallas(x_nchw, w1, b1, w2, b2, *, tile_hw=16384, donate_x=False):
    """PALayer forward.

    x_nchw: (N, C, H, W)
    w1: (C//8, C)   -- conv1 weight, torch (C//8, C, 1, 1) squeezed
    b1: (C//8,)
    w2: (1, C//8)   -- conv2 weight, torch (1, C//8, 1, 1) squeezed
    b2: (1,)
    """
    N, C, H, W = x_nchw.shape
    C8 = w1.shape[0]
    HW = H * W
    itemsize = jnp.dtype(x_nchw.dtype).itemsize

    # --- generation-aware VMEM budget (128 MiB v5e/v6e, 64 MiB per-TC v7x).
    try:
        vmem_cap = int(pltpu.get_tpu_info().vmem_capacity_bytes)
    except Exception:
        vmem_cap = 64 * 1024 * 1024          # conservative (v7x per-TC) fallback
    if vmem_cap <= 0:
        vmem_cap = 64 * 1024 * 1024
    tile_budget = vmem_cap // 2              # bytes allowed for per-step tiles
    vmem_limit = (3 * vmem_cap) // 4

    # Per-pixel VMEM bytes: double-buffered in + out blocks, the x*y product,
    # the f32 h/y temporaries, plus a little slack.
    per_pixel = 4 * C * itemsize + C * itemsize + 4 * C8 + 16
    max_t_by_vmem = max(128, (tile_budget // per_pixel) // 128 * 128)

    # --- choose the lane (pixel) tile.
    t_cap = max(128, min(int(tile_hw), max_t_by_vmem))
    if HW <= t_cap:
        if N == 1 and HW >= 256:
            # Keep >= 2 pixel tiles so the v7x megacore has work to split.
            t_hw = -(-((HW + 1) // 2) // 128) * 128
        else:
            t_hw = HW                        # single full-extent lane tile
    else:
        t_hw = (t_cap // 128) * 128
    grid_t = pl.cdiv(HW, t_hw)               # ragged last tile handled by Pallas

    # Free layout change only: NCHW -> (N, C, HW). No padding, no output slice.
    x3d = x_nchw.reshape(N, C, HW)
    b1_2d = b1.reshape(C8, 1)
    w2_col = w2.reshape(C8, 1)               # (1, C8) -> column vector
    b2_1d = b2.reshape(1)                    # scalar, lives in SMEM

    # NOTE: if HW is tiny and N is large, blocking several batch elements per
    # step would further amortize per-step overhead; not needed for typical
    # feature-map sizes, so we keep the simpler (N, grid_t) grid here.
    out3d = pl.pallas_call(
        _pa_kernel,
        out_shape=jax.ShapeDtypeStruct((N, C, HW), x3d.dtype),
        grid_spec=pltpu.PrefetchScalarGridSpec(
            num_scalar_prefetch=0,
            grid=(N, grid_t),
            in_specs=[
                # x tile: (1, C, t_hw), leading batch dim squeezed in the kernel
                pl.BlockSpec((None, C, t_hw), lambda n, t: (n, 0, t)),
                pl.BlockSpec((C8, C), lambda n, t: (0, 0)),     # w1 (resident)
                pl.BlockSpec((C8, 1), lambda n, t: (0, 0)),     # b1
                pl.BlockSpec((C8, 1), lambda n, t: (0, 0)),     # w2 (column)
                pl.BlockSpec(memory_space=pltpu.MemorySpace.SMEM),  # b2 scalar
            ],
            out_specs=pl.BlockSpec((None, C, t_hw), lambda n, t: (n, 0, t)),
        ),
        compiler_params=pltpu.CompilerParams(
            dimension_semantics=("parallel", "parallel"),
            vmem_limit_bytes=int(vmem_limit),
        ),
        input_output_aliases=({0: 0} if donate_x else {}),
    )(x3d, w1, b1_2d, w2_col, b2_1d)

    return out3d.reshape(N, C, H, W)


def pa_layer_ref(x_nchw, w1, b1, w2, b2):
    """Pure-JAX reference mirroring the PyTorch forward (for verification)."""
    xf = x_nchw.astype(jnp.float32)
    h = jnp.einsum("kc,nchw->nkhw", w1, xf) + b1[None, :, None, None]
    h = jnp.maximum(h, 0.0)
    y = jnp.einsum("ok,nkhw->nohw", w2, h) + b2[None, :, None, None]
    y = jax.nn.sigmoid(y)
    return (xf * y).astype(x_nchw.dtype)


if __name__ == "__main__":
    def run_case(key, N, C, H, W, tile_hw):
        C8 = C // 8
        kx, kw1, kb1, kw2, kb2 = jax.random.split(key, 5)
        x = jax.random.normal(kx, (N, C, H, W), dtype=jnp.float32)
        # PyTorch conv-weight layout with 1x1 kernels squeezed:
        #   conv1.weight: (C8, C, 1, 1) -> (C8, C); conv2.weight: (1, C8, 1, 1) -> (1, C8)
        w1 = jax.random.normal(kw1, (C8, C), dtype=jnp.float32) * 0.1
        b1 = jax.random.normal(kb1, (C8,), dtype=jnp.float32) * 0.1
        w2 = jax.random.normal(kw2, (1, C8), dtype=jnp.float32) * 0.1
        b2 = jax.random.normal(kb2, (1,), dtype=jnp.float32) * 0.1

        out = jax.block_until_ready(
            pa_layer_pallas(x, w1, b1, w2, b2, tile_hw=tile_hw))
        ref = pa_layer_ref(x, w1, b1, w2, b2)
        assert out.shape == (N, C, H, W)
        # approx=True reciprocal (EUP) inside the sigmoid -> small tolerance.
        assert jnp.allclose(out, ref, atol=5e-3, rtol=5e-3), "mismatch vs reference"

    key = jax.random.PRNGKey(0)
    k1, k2 = jax.random.split(key)
    # Small shapes consistent with the module (channel >= 8 so C//8 >= 1).
    run_case(k1, 2, 16, 16, 16, 16384)   # full-extent lane tile, grid (2, 1)
    run_case(k2, 1, 32, 17, 19, 128)     # HW=323: ragged last lane tile, grid (1, 3)

    print("KERNEL_OK")
</pallas_src>

<mosaic_0001>
module attributes {stable_mosaic.version = 11 : i64} {
  func.func @_pa_kernel(%arg0: i32, %arg1: i32, %arg2: memref<1x16x256xf32, #tpu.memory_space<vmem>>, %arg3: memref<2x16xf32, #tpu.memory_space<vmem>>, %arg4: memref<2x1xf32, #tpu.memory_space<vmem>>, %arg5: memref<2x1xf32, #tpu.memory_space<vmem>>, %arg6: memref<1xf32, #tpu.memory_space<smem>>, %arg7: memref<1x16x256xf32, #tpu.memory_space<vmem>>) attributes {dimension_semantics = [#tpu.dimension_semantics<parallel>, #tpu.dimension_semantics<parallel>], iteration_bounds = array<i64: 2, 1>, scalar_prefetch = 0 : i64, scratch_operands = 0 : i64, tpu.core_type = #tpu.core_type<tc>, window_params = [{transform_indices = @transform_0, window_bounds = array<i64: 1, 16, 256>}, {pipeline_mode = #tpu.pipeline_mode<synchronous>, transform_indices = @transform_1, window_bounds = array<i64: 2, 16>}, {pipeline_mode = #tpu.pipeline_mode<synchronous>, transform_indices = @transform_2, window_bounds = array<i64: 2, 1>}, {pipeline_mode = #tpu.pipeline_mode<synchronous>, transform_indices = @transform_3, window_bounds = array<i64: 2, 1>}, {transform_indices = @transform_4, window_bounds = array<i64: 1>}, {transform_indices = @transform_5, window_bounds = array<i64: 1, 16, 256>}]} {
    %c0 = arith.constant 0 : index
    %c0_0 = arith.constant 0 : index
    %c0_1 = arith.constant 0 : index
    %0 = vector.load %arg2[%c0, %c0_0, %c0_1] : memref<1x16x256xf32, #tpu.memory_space<vmem>>, vector<1x16x256xf32>
    %1 = vector.shape_cast %0 : vector<1x16x256xf32> to vector<16x256xf32>
    %c0_2 = arith.constant 0 : index
    %c0_3 = arith.constant 0 : index
    %2 = vector.load %arg3[%c0_2, %c0_3] : memref<2x16xf32, #tpu.memory_space<vmem>>, vector<2x16xf32>
    %cst = arith.constant dense<0.000000e+00> : vector<2x256xf32>
    %3 = tpu.matmul %2, %1, %cst {dimension_numbers = #tpu.dot_dimension_numbers<[1], [0], [0], [1], [0, 0, 1, 1], [], []>} : vector<2x16xf32>, vector<16x256xf32>, vector<2x256xf32> -> vector<2x256xf32>
    %c0_4 = arith.constant 0 : index
    %c0_5 = arith.constant 0 : index
    %4 = vector.load %arg4[%c0_4, %c0_5] : memref<2x1xf32, #tpu.memory_space<vmem>>, vector<2x1xf32>
    %5 = vector.broadcast %4 : vector<2x1xf32> to vector<2x256xf32>
    %6 = arith.addf %3, %5 : vector<2x256xf32>
    %cst_6 = arith.constant 0.000000e+00 : f32
    %7 = vector.broadcast %cst_6 : f32 to vector<2x256xf32>
    %8 = arith.maximumf %6, %7 : vector<2x256xf32>
    %c0_7 = arith.constant 0 : index
    %c0_8 = arith.constant 0 : index
    %9 = vector.load %arg5[%c0_7, %c0_8] : memref<2x1xf32, #tpu.memory_space<vmem>>, vector<2x1xf32>
    %10 = vector.broadcast %9 : vector<2x1xf32> to vector<2x256xf32>
    %11 = arith.mulf %8, %10 : vector<2x256xf32>
    %cst_9 = arith.constant dense<0.000000e+00> : vector<256xf32>
    %12 = vector.multi_reduction <add>, %11, %cst_9 [0] : vector<2x256xf32> to vector<256xf32>
    %13 = vector.shape_cast %12 : vector<256xf32> to vector<1x256xf32>
    %c0_10 = arith.constant 0 : index
    %14 = memref.load %arg6[%c0_10] : memref<1xf32, #tpu.memory_space<smem>>
    %15 = vector.broadcast %14 : f32 to vector<1x256xf32>
    %16 = arith.addf %13, %15 : vector<1x256xf32>
    %cst_11 = arith.constant 0.000000e+00 : f32
    %17 = vector.broadcast %cst_11 : f32 to vector<1x256xf32>
    %18 = arith.subf %17, %16 : vector<1x256xf32>
    %19 = math.exp %18 : vector<1x256xf32>
    %cst_12 = arith.constant 1.000000e+00 : f32
    %20 = vector.broadcast %cst_12 : f32 to vector<1x256xf32>
    %21 = arith.addf %20, %19 : vector<1x256xf32>
    %22 = tpu.reciprocal %21 {approx = true} : vector<1x256xf32> -> vector<1x256xf32>
    %23 = vector.broadcast %22 : vector<1x256xf32> to vector<16x256xf32>
    %24 = arith.mulf %1, %23 : vector<16x256xf32>
    %c0_13 = arith.constant 0 : index
    %c0_14 = arith.constant 0 : index
    %c0_15 = arith.constant 0 : index
    %25 = vector.load %arg7[%c0_13, %c0_14, %c0_15] : memref<1x16x256xf32, #tpu.memory_space<vmem>>, vector<1x16x256xf32>
    %26 = vector.shape_cast %25 : vector<1x16x256xf32> to vector<16x256xf32>
    %27 = vector.shape_cast %24 : vector<16x256xf32> to vector<1x16x256xf32>
    tpu.vector_store %arg7[%c0_13, %c0_14, %c0_15], %27 {strides = array<i32>} : memref<1x16x256xf32, #tpu.memory_space<vmem>>, vector<1x16x256xf32>,
    return
  }
  func.func @transform_0(%arg0: i32, %arg1: i32) -> (i32, i32, i32) {
    %c0_i32 = arith.constant 0 : i32
    %c0_i32_0 = arith.constant 0 : i32
    return %arg0, %c0_i32, %arg1 : i32, i32, i32
  }
  func.func @transform_1(%arg0: i32, %arg1: i32) -> (i32, i32) {
    %c0_i32 = arith.constant 0 : i32
    %c0_i32_0 = arith.constant 0 : i32
    %c0_i32_1 = arith.constant 0 : i32
    return %c0_i32, %c0_i32_0 : i32, i32
  }
  func.func @transform_2(%arg0: i32, %arg1: i32) -> (i32, i32) {
    %c0_i32 = arith.constant 0 : i32
    %c0_i32_0 = arith.constant 0 : i32
    %c0_i32_1 = arith.constant 0 : i32
    return %c0_i32, %c0_i32_0 : i32, i32
  }
  func.func @transform_3(%arg0: i32, %arg1: i32) -> (i32, i32) {
    %c0_i32 = arith.constant 0 : i32
    %c0_i32_0 = arith.constant 0 : i32
    %c0_i32_1 = arith.constant 0 : i32
    return %c0_i32, %c0_i32_0 : i32, i32
  }
  func.func @transform_4(%arg0: i32, %arg1: i32) -> i32 {
    %c0_i32 = arith.constant 0 : i32
    %c0_i32_0 = arith.constant 0 : i32
    return %c0_i32 : i32
  }
  func.func @transform_5(%arg0: i32, %arg1: i32) -> (i32, i32, i32) {
    %c0_i32 = arith.constant 0 : i32
    %c0_i32_0 = arith.constant 0 : i32
    return %arg0, %c0_i32, %arg1 : i32, i32, i32
  }
}

</mosaic_0001>

<llo_original>
// kernel: tpu_custom_call.1
$region0: #{tpu_custom_call.1}
  #allocation0 [shape = 'u32[]', space=smem, size = 0x4, offset = 0x4, fixed_abs, tag = 'smem constant byte address 0x4 - core index']
  #allocation1 [shape = 'u32[144,128]{1,0:T(1,128)}', space=vmem, size = 0x12000, scoped, tag = 'internal scratch']
  #allocation2 [shape = 'f32[1]{0:T(128)S(6)}', space=smem, size = 0x200, scoped, tag = 'scoped memory for tpu_custom_call.1']
  %s0 = inlined_call_operand.hbm [shape: f32[2,16,256], index: 0, kind: input, shape index: {}]
  %s1 = inlined_call_operand.vmem [shape: f32[2,16], index: 1, kind: input, shape index: {}]
  %s2 = inlined_call_operand.vmem [shape: f32[2,1], index: 2, kind: input, shape index: {}]
  %s3 = inlined_call_operand.vmem [shape: f32[2,1], index: 3, kind: input, shape index: {}]
  %s4 = inlined_call_operand.<no memory space> [shape: f32[1], index: 4, kind: input, shape index: {}]
  %s5 = inlined_call_operand.hbm [shape: f32[2,16,256], index: 5, kind: output, shape index: {}]
  %s6 = sld [smem:[#allocation0]]
  $region57: #{tpu_custom_call.1} parent=0
    _
  %s8 = ssub.s32 1, %s6
  %s9 = scalar_select 0, %s8, %s6
  %10 = sst [smem:[#allocation2]] %s4
  $region1: #{tpu_custom_call.1} parent=0
    #allocation3 [shape = 'u8[32768]{0}', space=vmem, size = 0x8000, scoped, tag = 'input window, operand 0']
    #allocation4 [shape = 's32[2]{0}', space=sflag, size = 0x8, scoped, tag = 'scoped memory for tpu_custom_call.1']
    #allocation5 [shape = 's32[2]{0}', space=sflag, size = 0x8, scoped, tag = 'scoped memory for tpu_custom_call.1']
    #allocation6 [shape = 'u8[32768]{0}', space=vmem, size = 0x8000, scoped, tag = 'output window, operand 0']
    %11 = vsyncpa [#allocation4], 0
    %s12 = scalar_lea.sflag [#allocation4], 1
    %13 = vsyncpa %s12, 0
    %14 = vsyncpa [#allocation5], 0
    %s15 = scalar_lea.sflag [#allocation5], 1
    %16 = vsyncpa %s15, 0
    loop: start=0, step=1, limit=4
    $region2: #{tpu_custom_call.1} parent=1 // loop_pre_header
      _
    $region3: #{tpu_custom_call.1} parent=1 // loop_header
      %s18 = sphi 0, %s22
      %p19 = scmp.ge.s32.totalorder %s18, 4
      %s25 = sphi 0, %s37
      %s26 = sphi 0, %s33
      %s27 = sphi 0, %s25
      %s28 = sphi 0, %s26
      %s29 = sphi 0, %s27
      %s30 = sphi 0, %s28
      %s42 = sphi 0, %s44
      %s45 = sphi 0, %s42
      %s46 = sphi 0, %s45
      %s62 = sphi 0, %s46
      %s66 = sphi 0, %s66
      %s68 = sphi 0, %s66
      %s69 = sphi 0, %s68
      %s83 = sphi 0, %s69
      %s87 = sphi 0, %s87
      %s89 = sphi 0, %s87
      %s90 = sphi 0, %s89
      %s104 = sphi 0, %s90
      %s108 = sphi 0, %s108
      %s110 = sphi 0, %s108
      %s111 = sphi 0, %s110
      %s125 = sphi 0, %s111
      %s129 = sphi 0, %s129
      %s131 = sphi 0, %s129
      %s132 = sphi 0, %s131
      %s146 = sphi 0, %s132
      %s154 = sphi 0, %s156
      %s157 = sphi 0, %s154
      %s158 = sphi 0, %s157
      %s174 = sphi 0, %s158
    $region4: #{tpu_custom_call.1} parent=1 // loop_header_branch
      %21 = sbr.rel (%p19) target = $region8
    $region5: #{tpu_custom_call.1} parent=1 // loop_body
      %s23 = ssub.s32 %s18, 1
      %s24 = ssub.s32 %s18, 2
      %s31 = sadd.s32 1, %s26
      %p32 = scmp.ge.s32.totalorder %s31, 1
      %s33 = scalar_select %p32, 0, %s31
      %s34 = sadd.s32 1, %s25
      %s35 = scalar_select %p32, %s34, %s25
      %p36 = scmp.ge.s32.totalorder %s35, 2
      %s37 = scalar_select %p36, 0, %s35
      %s38 = ssub.s32 %s25, %s37
      %s39 = ssub.s32 %s26, %s33
      %s40 = sor.u32 %s38, %s39
      %p41 = scmp.eq.s32.totalorder %s40, 0
      %s43 = sadd.s32 %s42, 1
      %s44 = scalar_select %p41, %s42, %s43
      %p47 = pneg %p41
      %p48 = scmp.eq.s32.totalorder %s18, 1
      %p49 = por %p47, %p48
      %p50 = scmp.ne.s32.totalorder %s42, %s45
      %p51 = scmp.eq.s32.totalorder %s18, 0
      %p52 = por %p50, %p51
      %p53 = scmp.ne.s32.totalorder %s42, %s45
      %p54 = scmp.eq.s32.totalorder %s23, 1
      %p55 = por %p53, %p54
      %p56 = scmp.ne.s32.totalorder %s45, %s46
      %p57 = scmp.eq.s32.totalorder %s23, 0
      %p58 = por %p56, %p57
      %p59 = scmp.ne.s32.totalorder %s45, %s46
      %p60 = scmp.eq.s32.totalorder %s24, 1
      %p61 = por %p59, %p60
      %p63 = scmp.ne.s32.totalorder %s46, %s62
      %p64 = scmp.eq.s32.totalorder %s24, 0
      %p65 = por %p63, %p64
      %s67 = sadd.s32 %s66, 1
      %p70 = scmp.eq.s32.totalorder %s18, 1
      %p71 = scmp.ne.s32.totalorder %s66, %s68
      %p72 = scmp.eq.s32.totalorder %s18, 0
      %p73 = por %p71, %p72
      %p74 = scmp.ne.s32.totalorder %s66, %s68
      %p75 = scmp.eq.s32.totalorder %s23, 1
      %p76 = por %p74, %p75
      %p77 = scmp.ne.s32.totalorder %s68, %s69
      %p78 = scmp.eq.s32.totalorder %s23, 0
      %p79 = por %p77, %p78
      %p80 = scmp.ne.s32.totalorder %s68, %s69
      %p81 = scmp.eq.s32.totalorder %s24, 1
      %p82 = por %p80, %p81
      %p84 = scmp.ne.s32.totalorder %s69, %s83
      %p85 = scmp.eq.s32.totalorder %s24, 0
      %p86 = por %p84, %p85
      %s88 = sadd.s32 %s87, 1
      %p91 = scmp.eq.s32.totalorder %s18, 1
      %p92 = scmp.ne.s32.totalorder %s87, %s89
      %p93 = scmp.eq.s32.totalorder %s18, 0
      %p94 = por %p92, %p93
      %p95 = scmp.ne.s32.totalorder %s87, %s89
      %p96 = scmp.eq.s32.totalorder %s23, 1
      %p97 = por %p95, %p96
      %p98 = scmp.ne.s32.totalorder %s89, %s90
      %p99 = scmp.eq.s32.totalorder %s23, 0
      %p100 = por %p98, %p99
      %p101 = scmp.ne.s32.totalorder %s89, %s90
      %p102 = scmp.eq.s32.totalorder %s24, 1
      %p103 = por %p101, %p102
      %p105 = scmp.ne.s32.totalorder %s90, %s104
      %p106 = scmp.eq.s32.totalorder %s24, 0
      %p107 = por %p105, %p106
      %s109 = sadd.s32 %s108, 1
      %p112 = scmp.eq.s32.totalorder %s18, 1
      %p113 = scmp.ne.s32.totalorder %s108, %s110
      %p114 = scmp.eq.s32.totalorder %s18, 0
      %p115 = por %p113, %p114
      %p116 = scmp.ne.s32.totalorder %s108, %s110
      %p117 = scmp.eq.s32.totalorder %s23, 1
      %p118 = por %p116, %p117
      %p119 = scmp.ne.s32.totalorder %s110, %s111
      %p120 = scmp.eq.s32.totalorder %s23, 0
      %p121 = por %p119, %p120
      %p122 = scmp.ne.s32.totalorder %s110, %s111
      %p123 = scmp.eq.s32.totalorder %s24, 1
      %p124 = por %p122, %p123
      %p126 = scmp.ne.s32.totalorder %s111, %s125
      %p127 = scmp.eq.s32.totalorder %s24, 0
      %p128 = por %p126, %p127
      %s130 = sadd.s32 %s129, 1
      %p133 = scmp.eq.s32.totalorder %s18, 1
      %p134 = scmp.ne.s32.totalorder %s129, %s131
      %p135 = scmp.eq.s32.totalorder %s18, 0
      %p136 = por %p134, %p135
      %p137 = scmp.ne.s32.totalorder %s129, %s131
      %p138 = scmp.eq.s32.totalorder %s23, 1
      %p139 = por %p137, %p138
      %p140 = scmp.ne.s32.totalorder %s131, %s132
      %p141 = scmp.eq.s32.totalorder %s23, 0
      %p142 = por %p140, %p141
      %p143 = scmp.ne.s32.totalorder %s131, %s132
      %p144 = scmp.eq.s32.totalorder %s24, 1
      %p145 = por %p143, %p144
      %p147 = scmp.ne.s32.totalorder %s132, %s146
      %p148 = scmp.eq.s32.totalorder %s24, 0
      %p149 = por %p147, %p148
      %s150 = ssub.s32 %s25, %s37
      %s151 = ssub.s32 %s26, %s33
      %s152 = sor.u32 %s150, %s151
      %p153 = scmp.eq.s32.totalorder %s152, 0
      %s155 = sadd.s32 %s154, 1
      %s156 = scalar_select %p153, %s154, %s155
      %p159 = pneg %p153
      %p160 = scmp.eq.s32.totalorder %s18, 1
      %p161 = por %p159, %p160
      %p162 = scmp.ne.s32.totalorder %s154, %s157
      %p163 = scmp.eq.s32.totalorder %s18, 0
      %p164 = por %p162, %p163
      %p165 = scmp.ne.s32.totalorder %s154, %s157
      %p166 = scmp.eq.s32.totalorder %s23, 1
      %p167 = por %p165, %p166
      %p168 = scmp.ne.s32.totalorder %s157, %s158
      %p169 = scmp.eq.s32.totalorder %s23, 0
      %p170 = por %p168, %p169
      %p171 = scmp.ne.s32.totalorder %s157, %s158
      %p172 = scmp.eq.s32.totalorder %s24, 1
      %p173 = por %p171, %p172
      %p175 = scmp.ne.s32.totalorder %s158, %s174
      %p176 = scmp.eq.s32.totalorder %s24, 0
      %p177 = por %p175, %p176
      %p178 = scmp.le.s32.totalorder 1, %s18
      %p179 = scmp.lt.s32.totalorder %s18, 3
      %p180 = pnand %p178, %p179
      %p181 = pneg %p180
      // Predicated region
      $region9: #{tpu_custom_call.1} parent=5 // pred_check
        _
      $region10: #{tpu_custom_call.1} parent=5 // pred_check_branch
        %183 = sbr.rel (%p180) target = $region12
      $region11: #{tpu_custom_call.1} parent=5 // pred_region
        %s184 = ssub.s32 %s18, 1
        // Predicated region
        $region13: #{tpu_custom_call.1} parent=11 // pred_check
          %p185 = pneg %p79
        $region14: #{tpu_custom_call.1} parent=11 // pred_check_branch
          %187 = sbr.rel (%p185) target = $region16
        $region15: #{tpu_custom_call.1} parent=11 // pred_region
          _
        $region16: #{tpu_custom_call.1} parent=11 // pred_fallthru
          _
        // Predicated region
        $region17: #{tpu_custom_call.1} parent=11 // pred_check
          %p188 = pneg %p100
        $region18: #{tpu_custom_call.1} parent=11 // pred_check_branch
          %190 = sbr.rel (%p188) target = $region20
        $region19: #{tpu_custom_call.1} parent=11 // pred_region
          _
        $region20: #{tpu_custom_call.1} parent=11 // pred_fallthru
          _
        // Predicated region
        $region21: #{tpu_custom_call.1} parent=11 // pred_check
          %p191 = pneg %p121
        $region22: #{tpu_custom_call.1} parent=11 // pred_check_branch
          %193 = sbr.rel (%p191) target = $region24
        $region23: #{tpu_custom_call.1} parent=11 // pred_region
          _
        $region24: #{tpu_custom_call.1} parent=11 // pred_fallthru
          _
        // Predicated region
        $region25: #{tpu_custom_call.1} parent=11 // pred_check
          %p194 = pneg %p142
        $region26: #{tpu_custom_call.1} parent=11 // pred_check_branch
          %196 = sbr.rel (%p194) target = $region28
        $region27: #{tpu_custom_call.1} parent=11 // pred_region
          _
        $region28: #{tpu_custom_call.1} parent=11 // pred_fallthru
          _
      $region12: #{tpu_custom_call.1} parent=5 // pred_fallthru
        _
      %p197 = scmp.lt.s32.totalorder %s18, 2
      // Predicated region
      $region29: #{tpu_custom_call.1} parent=5 // pred_check
        %p198 = pneg %p197
      $region30: #{tpu_custom_call.1} parent=5 // pred_check_branch
        %200 = sbr.rel (%p198) target = $region32
      $region31: #{tpu_custom_call.1} parent=5 // pred_region
        // Predicated region
        $region33: #{tpu_custom_call.1} parent=31 // pred_check
          %p201 = pneg %p52
        $region34: #{tpu_custom_call.1} parent=31 // pred_check_branch
          %203 = sbr.rel (%p201) target = $region36
        $region35: #{tpu_custom_call.1} parent=31 // pred_region
          %s204 = sand.u32 %s42, 1
          %s205 = scalar_lea.sflag [#allocation4], %s204
          %s206 = sand.u32 %s42, 1
          %s207 = smul.addr %s206, 32
          %s208 = scalar_lea.vmem [#allocation3], %s207
          %s209 = smul.u32 2, %s26
          %s211 = ssub.s32 512, 512
          %212 = vsyncadd %s205, %s211
          %s213 = smul.addr %s25, 4
          %s214 = sadd.s32 %s209, %s213
          %s215 = smul.addr %s214, 128
          %s216 = scalar_lea.hbm %s0, %s215
          %s217 = sshll.u32 %s208, 4
          %s218 = int_to_ptr.vmem [resolvable:$true] %s217
          %223 = dma.hbm_to_vmem [thread:$0]  %s216, 512, %s218, %s205, 256, 256, 16
        $region36: #{tpu_custom_call.1} parent=31 // pred_fallthru
          _
      $region32: #{tpu_custom_call.1} parent=5 // pred_fallthru
        _
      %p224 = scmp.le.s32.totalorder 1, %s18
      %p225 = scmp.lt.s32.totalorder %s18, 3
      %p226 = pnand %p224, %p225
      %p227 = pneg %p226
      // Predicated region
      $region37: #{tpu_custom_call.1} parent=5 // pred_check
        _
      $region38: #{tpu_custom_call.1} parent=5 // pred_check_branch
        %229 = sbr.rel (%p226) target = $region40
      $region39: #{tpu_custom_call.1} parent=5 // pred_region
        %s230 = ssub.s32 %s18, 1
        %s231 = sand.u32 %s45, 1
        %s232 = scalar_lea.sflag [#allocation4], %s231
        %s233 = sand.u32 %s45, 1
        %s234 = smul.addr %s233, 32
        %s235 = scalar_lea.vmem [#allocation3], %s234
        // Predicated region
        $region41: #{tpu_custom_call.1} parent=39 // pred_check
          %p236 = pneg %p58
        $region42: #{tpu_custom_call.1} parent=39 // pred_check_branch
          %238 = sbr.rel (%p236) target = $region44
        $region43: #{tpu_custom_call.1} parent=39 // pred_region
          %239 = dma.done %s232, 512
        $region44: #{tpu_custom_call.1} parent=39 // pred_fallthru
          _
        %s240 = sand.u32 %s45, 1
        %s241 = scalar_lea.sflag [#allocation4], %s240
        %s242 = sand.u32 %s45, 1
        %s243 = smul.addr %s242, 32
        %s244 = scalar_lea.vmem [#allocation3], %s243
        %p245 = pneg %p58
        %p246 = pneg %p55
        %p247 = pneg %p79
        %p248 = pneg %p76
        %p249 = pneg %p100
        %p250 = pneg %p97
        %p251 = pneg %p121
        %p252 = pneg %p118
        %p253 = pneg %p142
        %p254 = pneg %p139
        %p255 = pneg %p170
        %p256 = pneg %p167
        %s257 = sand.u32 %s157, 1
        %s258 = scalar_lea.sflag [#allocation5], %s257
        %s259 = sand.u32 %s157, 1
        %s260 = smul.addr %s259, 32
        %s261 = scalar_lea.vmem [#allocation6], %s260
        %s262 = smul.u32 2, %s28
        %s263 = smul.u32 2, %s28
        %v264 = vld [vmem:[%s235] sm:$0xff]
        %v265 = vld [vmem:[%s235 + $0x8] sm:$0xff]
        %v266 = vld [vmem:[%s235 + $0x10] sm:$0xff]
        %v267 = vld [vmem:[%s235 + $0x18] sm:$0xff]
        %v268 = vld [vmem:[%s1] sm:$0x3]
        %v269 = vld [vmem:[%s2] sm:$0x3]
        %271 = vset.pattern.permute.xlu0 0
        %272 = vperm.xlu0 %271, %v269
        %v273 = vpop.permute.xlu0 %272
        %vm275 = vcmask 130048
        %v277 = vsel %vm275, %v268, 0
        %279 = vmatprep.subr.mxu0 %v265
        %280 = vmatpush1.msra.mxu0 %v264
        %281 = vmatprep.subr.mxu0 %v267
        %282 = vmatpush1.msra.mxu0 %v266
        %283 = vmatprep.subr.mxu0 0.0
        %284 = vmatpush1.msra.mxu0 0.0
        %285 = vmatprep.subr.mxu0 0.0
        %286 = vmatpush1.msra.mxu0 0.0
        %287 = vmatprep.subr.mxu0 0.0
        %288 = vmatpush1.msra.mxu0 0.0
        %289 = vmatprep.subr.mxu0 0.0
        %290 = vmatpush1.msra.mxu0 0.0
        %291 = vmatprep.subr.mxu0 0.0
        %292 = vmatpush1.msra.mxu0 0.0
        %293 = vmatprep.subr.mxu0 0.0
        %294 = vmatpush1.msra.mxu0 0.0
        %295 = vmatprep.subr.mxu0 0.0
        %296 = vmatpush1.msra.mxu0 0.0
        %297 = vmatprep.subr.mxu0 0.0
        %298 = vmatpush1.msra.mxu0 0.0
        %299 = vmatprep.subr.mxu0 0.0
        %300 = vmatpush1.msra.mxu0 0.0
        %301 = vmatprep.subr.mxu0 0.0
        %302 = vmatpush1.msra.mxu0 0.0
        %303 = vmatprep.subr.mxu0 0.0
        %304 = vmatpush1.msra.mxu0 0.0
        %305 = vmatprep.subr.mxu0 0.0
        %306 = vmatpush1.msra.mxu0 0.0
        %307 = vmatprep.subr.mxu0 0.0
        %308 = vmatpush1.msra.mxu0 0.0
        %309 = vmatprep.subr.mxu0 0.0
        %310 = vmatpush1.msra.mxu0 0.0
        %311 = vmatprep.subr.mxu0 0.0
        %312 = vmatpush1.msra.mxu0 0.0
        %313 = vmatprep.subr.mxu0 0.0
        %314 = vmatpush1.msra.mxu0 0.0
        %315 = vmatprep.subr.mxu0 0.0
        %316 = vmatpush1.msra.mxu0 0.0
        %317 = vmatprep.subr.mxu0 0.0
        %318 = vmatpush1.msra.mxu0 0.0
        %319 = vmatprep.subr.mxu0 0.0
        %320 = vmatpush1.msra.mxu0 0.0
        %321 = vmatprep.subr.mxu0 0.0
        %322 = vmatpush1.msra.mxu0 0.0
        %323 = vmatprep.subr.mxu0 0.0
        %324 = vmatpush1.msra.mxu0 0.0
        %325 = vmatprep.subr.mxu0 0.0
        %326 = vmatpush1.msra.mxu0 0.0
        %327 = vmatprep.subr.mxu0 0.0
        %328 = vmatpush1.msra.mxu0 0.0
        %329 = vmatprep.subr.mxu0 0.0
        %330 = vmatpush1.msra.mxu0 0.0
        %331 = vmatprep.subr.mxu0 0.0
        %332 = vmatpush1.msra.mxu0 0.0
        %333 = vmatprep.subr.mxu0 0.0
        %334 = vmatpush1.msra.mxu0 0.0
        %335 = vmatprep.subr.mxu0 0.0
        %336 = vmatpush1.msra.mxu0 0.0
        %337 = vmatprep.subr.mxu0 0.0
        %338 = vmatpush1.msra.mxu0 0.0
        %339 = vmatprep.subr.mxu0 0.0
        %340 = vmatpush1.msra.mxu0 0.0
        %341 = vmatprep.subr.mxu0 0.0
        %342 = vmatpush1.msra.mxu0 0.0
        %343 = vmatprep.mubr.f32.mxu0 0.0
        %344 = vmatmul.mubr.f32.gmra.mrb[0].mxu0 %v277
        %v345 = vpop.f32.mrb[0].mxu0
        %v346 = vadd.f32 %v273, %v345
        %v347 = vpop.f32.mrb[0].mxu0
        %v348 = vadd.f32 %v273, %v347
        %349 = vdwg.mxu0
        %v350 = vmax.f32 %v346, 0.0
        %v351 = vmax.f32 %v348, 0.0
        %v352 = vld [vmem:[%s3] sm:$0x3]
        %354 = vset.pattern.permute.xlu0 0
        %355 = vperm.xlu0 %354, %v352
        %v356 = vpop.permute.xlu0 %355
        %v358 = vmul.f32 %v350, %v356
        %v359 = vmul.f32 %v351, %v356
        %vm360 = vcmask 1041408
        %v361 = vsel %vm360, %v358, 0.0
        %v362 = vrot.slane %v361, 4
        %v363 = vadd.f32 %v361, %v362
        %v364 = vrot.slane %v363, 2
        %v365 = vadd.f32 %v363, %v364
        %v366 = vrot.slane %v365, 1
        %v367 = vadd.f32 %v365, %v366
        %v368 = vsel %vm360, %v359, 0.0
        %v369 = vrot.slane %v368, 4
        %v370 = vadd.f32 %v368, %v369
        %v371 = vrot.slane %v370, 2
        %v372 = vadd.f32 %v370, %v371
        %v373 = vrot.slane %v372, 1
        %v374 = vadd.f32 %v372, %v373
        %s375 = sld [smem:[#allocation2]]
        %v376 = vstv %s375
        %v377 = vadd.f32 %v367, %v376
        %v378 = vadd.f32 %v374, %v376
        %v379 = vsub.f32 0.0, %v377
        %v380 = vsub.f32 0.0, %v378
        %v381 = vmul.f32 %v379, 1.442695
        %v382 = vpow.pop %v381
        %v383 = vmul.f32 %v380, 1.442695
        %v384 = vpow.pop %v383
        %v385 = vadd.f32 %v382, 1.0
        %v386 = vadd.f32 %v384, 1.0
        %v387 = vrcp.pop %v385
        %v388 = vrcp.pop %v386
        %v389 = vmul.f32 %v264, %v387
        %v390 = vmul.f32 %v265, %v388
        %v391 = vmul.f32 %v266, %v387
        %v392 = vmul.f32 %v267, %v388
        %393 = vst [vmem:[%s261] sm:$0xff] %v389
        %394 = vst [vmem:[%s261 + $0x8] sm:$0xff] %v390
        %395 = vst [vmem:[%s261 + $0x10] sm:$0xff] %v391
        %396 = vst [vmem:[%s261 + $0x18] sm:$0xff] %v392
        %s397 = sand.u32 %s157, 1
        %s398 = scalar_lea.sflag [#allocation5], %s397
        %s399 = sand.u32 %s157, 1
        %s400 = smul.addr %s399, 32
        %s401 = scalar_lea.vmem [#allocation6], %s400
        // Predicated region
        $region45: #{tpu_custom_call.1} parent=39 // pred_check
          %p402 = pneg %p167
        $region46: #{tpu_custom_call.1} parent=39 // pred_check_branch
          %404 = sbr.rel (%p402) target = $region48
        $region47: #{tpu_custom_call.1} parent=39 // pred_region
          %s405 = smul.u32 2, %s28
          %s407 = ssub.s32 512, 512
          %408 = vsyncadd %s398, %s407
          %s409 = smul.addr %s27, 4
          %s410 = sadd.s32 %s405, %s409
          %s411 = smul.addr %s410, 128
          %s412 = scalar_lea.hbm %s5, %s411
          %s413 = sshll.u32 %s401, 4
          %s414 = int_to_ptr.vmem [resolvable:$true] %s413
          %419 = dma.vmem_to_hbm [thread:$0]  %s414, 512, %s412, %s398, 256, 256, 16
        $region48: #{tpu_custom_call.1} parent=39 // pred_fallthru
          _
      $region40: #{tpu_custom_call.1} parent=5 // pred_fallthru
        _
      %p420 = scmp.le.s32.totalorder 2, %s18
      // Predicated region
      $region49: #{tpu_custom_call.1} parent=5 // pred_check
        %p421 = pneg %p420
      $region50: #{tpu_custom_call.1} parent=5 // pred_check_branch
        %423 = sbr.rel (%p421) target = $region52
      $region51: #{tpu_custom_call.1} parent=5 // pred_region
        %s424 = ssub.s32 %s18, 2
        // Predicated region
        $region53: #{tpu_custom_call.1} parent=51 // pred_check
          %p425 = pneg %p173
        $region54: #{tpu_custom_call.1} parent=51 // pred_check_branch
          %427 = sbr.rel (%p425) target = $region56
        $region55: #{tpu_custom_call.1} parent=51 // pred_region
          %s428 = sand.u32 %s158, 1
          %s429 = scalar_lea.sflag [#allocation5], %s428
          %s430 = sand.u32 %s158, 1
          %s431 = smul.addr %s430, 32
          %s432 = scalar_lea.vmem [#allocation6], %s431
          %433 = dma.done %s429, 512
        $region56: #{tpu_custom_call.1} parent=51 // pred_fallthru
          _
      $region52: #{tpu_custom_call.1} parent=5 // pred_fallthru
        _
    $region6: #{tpu_custom_call.1} parent=1 // loop_footer
      %s22 = sadd.s32 1, %s18
    $region7: #{tpu_custom_call.1} parent=1 // loop_footer_branch
      %17 = sbr.rel target = $region3
    $region8: #{tpu_custom_call.1} parent=1 // loop_exit
      _
    %434 = vsyncpa [#allocation4], 1
    %s435 = scalar_lea.sflag [#allocation4], 1
    %436 = vsyncpa %s435, 1
    %437 = vsyncpa [#allocation5], 1
    %s438 = scalar_lea.sflag [#allocation5], 1
    %439 = vsyncpa %s438, 1

</llo_original>
